<compile_context>
chip_gen: v7x
topology: tpu7x:2x2x1
jax: 0.10.0
libtpu: 0.0.40
codegen_flags: <defaults>
</compile_context>

<pallas_src>
import functools

import jax
import jax.numpy as jnp
from jax.experimental import pallas as pl
from jax.experimental.pallas import tpu as pltpu


def _round_up(v, m):
    return ((v + m - 1) // m) * m


def _fcdqn_kernel(x_ref, w1_ref, b1_ref, w2_ref, b2_ref, o_ref):
    """One batch tile: o = tanh(x @ W1 + b1) @ W2 + b2."""
    # Hidden layer: bf16 x bf16 -> f32 accumulation on the MXU; bias add and
    # tanh in f32 (VPU / EUP, both pure slack here).  Casts are in-kernel so
    # the wrapper never rewrites x.
    x = x_ref[...].astype(jnp.bfloat16)
    w1 = w1_ref[...].astype(jnp.bfloat16)
    h = jnp.tanh(
        jnp.dot(x, w1, preferred_element_type=jnp.float32) + b1_ref[...]
    )
    # Output layer (no nonlinearity on Q-values).
    w2 = w2_ref[...].astype(jnp.bfloat16)
    q = (
        jnp.dot(h.astype(jnp.bfloat16), w2, preferred_element_type=jnp.float32)
        + b2_ref[...]
    )
    o_ref[...] = q.astype(o_ref.dtype)


@functools.partial(jax.jit, static_argnames=("block_b",))
def _fcdqn_pallas(x, w1, b1, w2, b2, *, block_b=2048):
    """Pallas path: x (B, F) f32 -> (B, n_actions) f32."""
    B, F = x.shape
    H = w1.shape[1]
    A = w2.shape[1]

    # Batch tile: large (amortizes per-grid-step overhead) but capped so the
    # grid always has >= 2 steps -> megacore "parallel" axis feeds both v7x
    # TensorCores (harmless no-op on single-TC v5e/v6e).
    TB = min(_round_up(block_b, 8), max(8, _round_up(pl.cdiv(B, 2), 8)))
    B_pad = _round_up(B, TB)

    # Only the ragged batch tail is padded (no full f32->bf16 rewrite of x).
    x_p = x if B_pad == B else jnp.pad(x, ((0, B_pad - B), (0, 0)))

    grid = (B_pad // TB,)
    q_pad = pl.pallas_call(
        _fcdqn_kernel,
        out_shape=jax.ShapeDtypeStruct((B_pad, A), jnp.float32),
        grid=grid,
        in_specs=[
            pl.BlockSpec((TB, F), lambda i: (i, 0)),  # x: tiled along batch
            pl.BlockSpec((F, H), lambda i: (0, 0)),   # W1: VMEM-resident
            pl.BlockSpec((1, H), lambda i: (0, 0)),   # b1: VMEM-resident
            pl.BlockSpec((H, A), lambda i: (0, 0)),   # W2: VMEM-resident
            pl.BlockSpec((1, A), lambda i: (0, 0)),   # b2: VMEM-resident
        ],
        out_specs=pl.BlockSpec((TB, A), lambda i: (i, 0)),  # un-padded Q block
        compiler_params=pltpu.CompilerParams(
            dimension_semantics=("parallel",),        # megacore on v7x
        ),
    )(x_p, w1, b1, w2, b2)

    return q_pad if B_pad == B else q_pad[:B]


def fcdqn_forward(x, w1, b1, w2, b2, *, block_b=2048, min_pallas_batch=64):
    """FCDQN forward. Tiny (acting) batches use plain XLA; larger use Pallas."""
    if x.shape[0] < min_pallas_batch:
        return jnp.tanh(x @ w1 + b1) @ w2 + b2
    return _fcdqn_pallas(x, w1, b1, w2, b2, block_b=block_b)


def init_params(key, n_inputfeats, n_hidden, n_actions):
    """Deterministic init mimicking torch.nn.Linear (uniform +/- 1/sqrt(fan_in))."""
    k1, k2, k3, k4 = jax.random.split(key, 4)
    lim1 = 1.0 / jnp.sqrt(jnp.float32(n_inputfeats))
    lim2 = 1.0 / jnp.sqrt(jnp.float32(n_hidden))
    w1 = jax.random.uniform(k1, (n_inputfeats, n_hidden), jnp.float32, -lim1, lim1)
    b1 = jax.random.uniform(k2, (1, n_hidden), jnp.float32, -lim1, lim1)
    w2 = jax.random.uniform(k3, (n_hidden, n_actions), jnp.float32, -lim2, lim2)
    b2 = jax.random.uniform(k4, (1, n_actions), jnp.float32, -lim2, lim2)
    return w1, b1, w2, b2


if __name__ == "__main__":
    key = jax.random.PRNGKey(0)
    kx1, kx2, kp = jax.random.split(key, 3)

    n_inputfeats = 16
    n_hidden = 32        # module default n_hiddens=[30]; 32 keeps the same structure
    n_actions = 4

    w1, b1, w2, b2 = init_params(kp, n_inputfeats, n_hidden, n_actions)

    # --- Training-batch path (exercises the Pallas kernel) ---------------------
    # B=300 is not a multiple of the tile: TB is capped to 152 (grid=(2,)) and
    # only the 4-row ragged tail is padded.
    batch_train = 300
    x_train = jax.random.normal(kx1, (batch_train, n_inputfeats), jnp.float32)
    q_train = fcdqn_forward(x_train, w1, b1, w2, b2)
    jax.block_until_ready(q_train)
    assert q_train.shape == (batch_train, n_actions)

    # Reference with the same bf16-cast math (tight check).
    xb = x_train.astype(jnp.bfloat16).astype(jnp.float32)
    w1b = w1.astype(jnp.bfloat16).astype(jnp.float32)
    w2b = w2.astype(jnp.bfloat16).astype(jnp.float32)
    h_ref = jnp.tanh(xb @ w1b + b1)
    q_ref_bf = h_ref.astype(jnp.bfloat16).astype(jnp.float32) @ w2b + b2
    assert jnp.allclose(q_train, q_ref_bf, atol=2e-3, rtol=2e-3)

    # Pure-f32 reference (loose check — only bf16 rounding separates them).
    q_ref_f32 = jnp.tanh(x_train @ w1 + b1) @ w2 + b2
    assert jnp.allclose(q_train, q_ref_f32, atol=5e-2, rtol=5e-2)

    # --- Larger divisible batch (no padding, bigger tiles, still grid>=2) ------
    batch_big = 4096
    x_big = jax.random.normal(kx2, (batch_big, n_inputfeats), jnp.float32)
    q_big = fcdqn_forward(x_big, w1, b1, w2, b2, block_b=2048)
    jax.block_until_ready(q_big)
    assert q_big.shape == (batch_big, n_actions)
    q_big_ref = jnp.tanh(x_big @ w1 + b1) @ w2 + b2
    assert jnp.allclose(q_big, q_big_ref, atol=5e-2, rtol=5e-2)

    # --- Acting path (tiny batch -> plain XLA fusion, no pallas_call) ----------
    batch_act = 8
    x_act = jax.random.normal(kx2, (batch_act, n_inputfeats), jnp.float32)
    q_act = fcdqn_forward(x_act, w1, b1, w2, b2)
    jax.block_until_ready(q_act)
    q_act_ref = jnp.tanh(x_act @ w1 + b1) @ w2 + b2
    assert q_act.shape == (batch_act, n_actions)
    assert jnp.allclose(q_act, q_act_ref, atol=1e-5, rtol=1e-5)

    print("KERNEL_OK")
</pallas_src>

<mosaic_0001>
module attributes {stable_mosaic.version = 11 : i64} {
  func.func @_fcdqn_kernel(%arg0: i32, %arg1: memref<152x16xf32, #tpu.memory_space<vmem>>, %arg2: memref<16x32xf32, #tpu.memory_space<vmem>>, %arg3: memref<1x32xf32, #tpu.memory_space<vmem>>, %arg4: memref<32x4xf32, #tpu.memory_space<vmem>>, %arg5: memref<1x4xf32, #tpu.memory_space<vmem>>, %arg6: memref<152x4xf32, #tpu.memory_space<vmem>>) attributes {dimension_semantics = [#tpu.dimension_semantics<parallel>], iteration_bounds = array<i64: 2>, scalar_prefetch = 0 : i64, scratch_operands = 0 : i64, tpu.core_type = #tpu.core_type<tc>, window_params = [{transform_indices = @transform_0, window_bounds = array<i64: 152, 16>}, {pipeline_mode = #tpu.pipeline_mode<synchronous>, transform_indices = @transform_1, window_bounds = array<i64: 16, 32>}, {pipeline_mode = #tpu.pipeline_mode<synchronous>, transform_indices = @transform_2, window_bounds = array<i64: 1, 32>}, {pipeline_mode = #tpu.pipeline_mode<synchronous>, transform_indices = @transform_3, window_bounds = array<i64: 32, 4>}, {pipeline_mode = #tpu.pipeline_mode<synchronous>, transform_indices = @transform_4, window_bounds = array<i64: 1, 4>}, {transform_indices = @transform_5, window_bounds = array<i64: 152, 4>}]} {
    %c0 = arith.constant 0 : index
    %c0_0 = arith.constant 0 : index
    %0 = vector.load %arg1[%c0, %c0_0] : memref<152x16xf32, #tpu.memory_space<vmem>>, vector<152x16xf32>
    %1 = arith.truncf %0 : vector<152x16xf32> to vector<152x16xbf16>
    %c0_1 = arith.constant 0 : index
    %c0_2 = arith.constant 0 : index
    %2 = vector.load %arg2[%c0_1, %c0_2] : memref<16x32xf32, #tpu.memory_space<vmem>>, vector<16x32xf32>
    %3 = arith.truncf %2 : vector<16x32xf32> to vector<16x32xbf16>
    %cst = arith.constant dense<0.000000e+00> : vector<152x32xf32>
    %4 = tpu.matmul %1, %3, %cst {dimension_numbers = #tpu.dot_dimension_numbers<[1], [0], [0], [1], [0, 0, 1, 1], [], []>} : vector<152x16xbf16>, vector<16x32xbf16>, vector<152x32xf32> -> vector<152x32xf32>
    %c0_3 = arith.constant 0 : index
    %c0_4 = arith.constant 0 : index
    %5 = vector.load %arg3[%c0_3, %c0_4] : memref<1x32xf32, #tpu.memory_space<vmem>>, vector<1x32xf32>
    %6 = vector.broadcast %5 : vector<1x32xf32> to vector<152x32xf32>
    %7 = arith.addf %4, %6 : vector<152x32xf32>
    %8 = math.tanh %7 : vector<152x32xf32>
    %c0_5 = arith.constant 0 : index
    %c0_6 = arith.constant 0 : index
    %9 = vector.load %arg4[%c0_5, %c0_6] : memref<32x4xf32, #tpu.memory_space<vmem>>, vector<32x4xf32>
    %10 = arith.truncf %9 : vector<32x4xf32> to vector<32x4xbf16>
    %11 = arith.truncf %8 : vector<152x32xf32> to vector<152x32xbf16>
    %cst_7 = arith.constant dense<0.000000e+00> : vector<152x4xf32>
    %12 = tpu.matmul %11, %10, %cst_7 {dimension_numbers = #tpu.dot_dimension_numbers<[1], [0], [0], [1], [0, 0, 1, 1], [], []>} : vector<152x32xbf16>, vector<32x4xbf16>, vector<152x4xf32> -> vector<152x4xf32>
    %c0_8 = arith.constant 0 : index
    %c0_9 = arith.constant 0 : index
    %13 = vector.load %arg5[%c0_8, %c0_9] : memref<1x4xf32, #tpu.memory_space<vmem>>, vector<1x4xf32>
    %14 = vector.broadcast %13 : vector<1x4xf32> to vector<152x4xf32>
    %15 = arith.addf %12, %14 : vector<152x4xf32>
    %c0_10 = arith.constant 0 : index
    %c0_11 = arith.constant 0 : index
    %16 = vector.load %arg6[%c0_10, %c0_11] : memref<152x4xf32, #tpu.memory_space<vmem>>, vector<152x4xf32>
    tpu.vector_store %arg6[%c0_10, %c0_11], %15 {strides = array<i32>} : memref<152x4xf32, #tpu.memory_space<vmem>>, vector<152x4xf32>,
    return
  }
  func.func @transform_0(%arg0: i32) -> (i32, i32) {
    %c0_i32 = arith.constant 0 : i32
    %c0_i32_0 = arith.constant 0 : i32
    return %arg0, %c0_i32 : i32, i32
  }
  func.func @transform_1(%arg0: i32) -> (i32, i32) {
    %c0_i32 = arith.constant 0 : i32
    %c0_i32_0 = arith.constant 0 : i32
    %c0_i32_1 = arith.constant 0 : i32
    return %c0_i32, %c0_i32_0 : i32, i32
  }
  func.func @transform_2(%arg0: i32) -> (i32, i32) {
    %c0_i32 = arith.constant 0 : i32
    %c0_i32_0 = arith.constant 0 : i32
    %c0_i32_1 = arith.constant 0 : i32
    return %c0_i32, %c0_i32_0 : i32, i32
  }
  func.func @transform_3(%arg0: i32) -> (i32, i32) {
    %c0_i32 = arith.constant 0 : i32
    %c0_i32_0 = arith.constant 0 : i32
    %c0_i32_1 = arith.constant 0 : i32
    return %c0_i32, %c0_i32_0 : i32, i32
  }
  func.func @transform_4(%arg0: i32) -> (i32, i32) {
    %c0_i32 = arith.constant 0 : i32
    %c0_i32_0 = arith.constant 0 : i32
    %c0_i32_1 = arith.constant 0 : i32
    return %c0_i32, %c0_i32_0 : i32, i32
  }
  func.func @transform_5(%arg0: i32) -> (i32, i32) {
    %c0_i32 = arith.constant 0 : i32
    %c0_i32_0 = arith.constant 0 : i32
    return %arg0, %c0_i32 : i32, i32
  }
}

</mosaic_0001>

<llo_original>
// kernel: _fcdqn_pallas.1
$region0: #{_fcdqn_pallas.1}
  #allocation0 [shape = 'u32[]', space=smem, size = 0x4, offset = 0x4, fixed_abs, tag = 'smem constant byte address 0x4 - core index']
  #allocation1 [shape = 'u32[144,128]{1,0:T(1,128)}', space=vmem, size = 0x12000, scoped, tag = 'internal scratch']
  %s0 = inlined_call_operand.vmem [shape: f32[304,16], index: 0, kind: input, shape index: {}]
  %s1 = inlined_call_operand.vmem [shape: f32[16,32], index: 1, kind: input, shape index: {}]
  %s2 = inlined_call_operand.vmem [shape: f32[1,32], index: 2, kind: input, shape index: {}]
  %s3 = inlined_call_operand.vmem [shape: f32[32,4], index: 3, kind: input, shape index: {}]
  %s4 = inlined_call_operand.vmem [shape: f32[1,4], index: 4, kind: input, shape index: {}]
  %s5 = inlined_call_operand.vmem [shape: f32[304,4], index: 5, kind: output, shape index: {}]
  %s6 = sld [smem:[#allocation0]]
  $region53: #{_fcdqn_pallas.1} parent=0
    _
  %s8 = ssub.s32 1, %s6
  %s9 = scalar_select 0, %s8, %s6
  loop: start=0, step=1, limit=4
  $region2: #{_fcdqn_pallas.1} parent=0 // loop_pre_header
    _
  $region3: #{_fcdqn_pallas.1} parent=0 // loop_header
    %s11 = sphi 0, %s15
    %p12 = scmp.ge.s32.totalorder %s11, 4
    %s21 = sphi 0, %s23
    %s24 = sphi 0, %s21
    %s25 = sphi 0, %s24
    %s41 = sphi 0, %s25
    %s45 = sphi 0, %s45
    %s47 = sphi 0, %s45
    %s48 = sphi 0, %s47
    %s62 = sphi 0, %s48
    %s66 = sphi 0, %s66
    %s68 = sphi 0, %s66
    %s69 = sphi 0, %s68
    %s83 = sphi 0, %s69
    %s87 = sphi 0, %s87
    %s89 = sphi 0, %s87
    %s90 = sphi 0, %s89
    %s104 = sphi 0, %s90
    %s108 = sphi 0, %s108
    %s110 = sphi 0, %s108
    %s111 = sphi 0, %s110
    %s125 = sphi 0, %s111
    %s131 = sphi 0, %s133
    %s134 = sphi 0, %s131
    %s135 = sphi 0, %s134
    %s151 = sphi 0, %s135
  $region4: #{_fcdqn_pallas.1} parent=0 // loop_header_branch
    %14 = sbr.rel (%p12) target = $region8
  $region5: #{_fcdqn_pallas.1} parent=0 // loop_body
    %s16 = ssub.s32 %s11, 1
    %s17 = ssub.s32 %s11, 2
    %s18 = sadd.s32 %s11, 1
    %s19 = ssub.s32 %s11, %s18
    %p20 = scmp.eq.s32.totalorder %s19, 0
    %s22 = sadd.s32 %s21, 1
    %s23 = scalar_select %p20, %s21, %s22
    %p26 = pneg %p20
    %p27 = scmp.eq.s32.totalorder %s11, 1
    %p28 = por %p26, %p27
    %p29 = scmp.ne.s32.totalorder %s21, %s24
    %p30 = scmp.eq.s32.totalorder %s11, 0
    %p31 = por %p29, %p30
    %p32 = scmp.ne.s32.totalorder %s21, %s24
    %p33 = scmp.eq.s32.totalorder %s16, 1
    %p34 = por %p32, %p33
    %p35 = scmp.ne.s32.totalorder %s24, %s25
    %p36 = scmp.eq.s32.totalorder %s16, 0
    %p37 = por %p35, %p36
    %p38 = scmp.ne.s32.totalorder %s24, %s25
    %p39 = scmp.eq.s32.totalorder %s17, 1
    %p40 = por %p38, %p39
    %p42 = scmp.ne.s32.totalorder %s25, %s41
    %p43 = scmp.eq.s32.totalorder %s17, 0
    %p44 = por %p42, %p43
    %s46 = sadd.s32 %s45, 1
    %p49 = scmp.eq.s32.totalorder %s11, 1
    %p50 = scmp.ne.s32.totalorder %s45, %s47
    %p51 = scmp.eq.s32.totalorder %s11, 0
    %p52 = por %p50, %p51
    %p53 = scmp.ne.s32.totalorder %s45, %s47
    %p54 = scmp.eq.s32.totalorder %s16, 1
    %p55 = por %p53, %p54
    %p56 = scmp.ne.s32.totalorder %s47, %s48
    %p57 = scmp.eq.s32.totalorder %s16, 0
    %p58 = por %p56, %p57
    %p59 = scmp.ne.s32.totalorder %s47, %s48
    %p60 = scmp.eq.s32.totalorder %s17, 1
    %p61 = por %p59, %p60
    %p63 = scmp.ne.s32.totalorder %s48, %s62
    %p64 = scmp.eq.s32.totalorder %s17, 0
    %p65 = por %p63, %p64
    %s67 = sadd.s32 %s66, 1
    %p70 = scmp.eq.s32.totalorder %s11, 1
    %p71 = scmp.ne.s32.totalorder %s66, %s68
    %p72 = scmp.eq.s32.totalorder %s11, 0
    %p73 = por %p71, %p72
    %p74 = scmp.ne.s32.totalorder %s66, %s68
    %p75 = scmp.eq.s32.totalorder %s16, 1
    %p76 = por %p74, %p75
    %p77 = scmp.ne.s32.totalorder %s68, %s69
    %p78 = scmp.eq.s32.totalorder %s16, 0
    %p79 = por %p77, %p78
    %p80 = scmp.ne.s32.totalorder %s68, %s69
    %p81 = scmp.eq.s32.totalorder %s17, 1
    %p82 = por %p80, %p81
    %p84 = scmp.ne.s32.totalorder %s69, %s83
    %p85 = scmp.eq.s32.totalorder %s17, 0
    %p86 = por %p84, %p85
    %s88 = sadd.s32 %s87, 1
    %p91 = scmp.eq.s32.totalorder %s11, 1
    %p92 = scmp.ne.s32.totalorder %s87, %s89
    %p93 = scmp.eq.s32.totalorder %s11, 0
    %p94 = por %p92, %p93
    %p95 = scmp.ne.s32.totalorder %s87, %s89
    %p96 = scmp.eq.s32.totalorder %s16, 1
    %p97 = por %p95, %p96
    %p98 = scmp.ne.s32.totalorder %s89, %s90
    %p99 = scmp.eq.s32.totalorder %s16, 0
    %p100 = por %p98, %p99
    %p101 = scmp.ne.s32.totalorder %s89, %s90
    %p102 = scmp.eq.s32.totalorder %s17, 1
    %p103 = por %p101, %p102
    %p105 = scmp.ne.s32.totalorder %s90, %s104
    %p106 = scmp.eq.s32.totalorder %s17, 0
    %p107 = por %p105, %p106
    %s109 = sadd.s32 %s108, 1
    %p112 = scmp.eq.s32.totalorder %s11, 1
    %p113 = scmp.ne.s32.totalorder %s108, %s110
    %p114 = scmp.eq.s32.totalorder %s11, 0
    %p115 = por %p113, %p114
    %p116 = scmp.ne.s32.totalorder %s108, %s110
    %p117 = scmp.eq.s32.totalorder %s16, 1
    %p118 = por %p116, %p117
    %p119 = scmp.ne.s32.totalorder %s110, %s111
    %p120 = scmp.eq.s32.totalorder %s16, 0
    %p121 = por %p119, %p120
    %p122 = scmp.ne.s32.totalorder %s110, %s111
    %p123 = scmp.eq.s32.totalorder %s17, 1
    %p124 = por %p122, %p123
    %p126 = scmp.ne.s32.totalorder %s111, %s125
    %p127 = scmp.eq.s32.totalorder %s17, 0
    %p128 = por %p126, %p127
    %s129 = ssub.s32 %s11, %s18
    %p130 = scmp.eq.s32.totalorder %s129, 0
    %s132 = sadd.s32 %s131, 1
    %s133 = scalar_select %p130, %s131, %s132
    %p136 = pneg %p130
    %p137 = scmp.eq.s32.totalorder %s11, 1
    %p138 = por %p136, %p137
    %p139 = scmp.ne.s32.totalorder %s131, %s134
    %p140 = scmp.eq.s32.totalorder %s11, 0
    %p141 = por %p139, %p140
    %p142 = scmp.ne.s32.totalorder %s131, %s134
    %p143 = scmp.eq.s32.totalorder %s16, 1
    %p144 = por %p142, %p143
    %p145 = scmp.ne.s32.totalorder %s134, %s135
    %p146 = scmp.eq.s32.totalorder %s16, 0
    %p147 = por %p145, %p146
    %p148 = scmp.ne.s32.totalorder %s134, %s135
    %p149 = scmp.eq.s32.totalorder %s17, 1
    %p150 = por %p148, %p149
    %p152 = scmp.ne.s32.totalorder %s135, %s151
    %p153 = scmp.eq.s32.totalorder %s17, 0
    %p154 = por %p152, %p153
    %p155 = scmp.le.s32.totalorder 1, %s11
    %p156 = scmp.lt.s32.totalorder %s11, 3
    %p157 = pnand %p155, %p156
    %p158 = pneg %p157
    // Predicated region
    $region9: #{_fcdqn_pallas.1} parent=5 // pred_check
      _
    $region10: #{_fcdqn_pallas.1} parent=5 // pred_check_branch
      %160 = sbr.rel (%p157) target = $region12
    $region11: #{_fcdqn_pallas.1} parent=5 // pred_region
      %s161 = ssub.s32 %s11, 1
      // Predicated region
      $region13: #{_fcdqn_pallas.1} parent=11 // pred_check
        %p162 = pneg %p58
      $region14: #{_fcdqn_pallas.1} parent=11 // pred_check_branch
        %164 = sbr.rel (%p162) target = $region16
      $region15: #{_fcdqn_pallas.1} parent=11 // pred_region
        _
      $region16: #{_fcdqn_pallas.1} parent=11 // pred_fallthru
        _
      // Predicated region
      $region17: #{_fcdqn_pallas.1} parent=11 // pred_check
        %p165 = pneg %p79
      $region18: #{_fcdqn_pallas.1} parent=11 // pred_check_branch
        %167 = sbr.rel (%p165) target = $region20
      $region19: #{_fcdqn_pallas.1} parent=11 // pred_region
        _
      $region20: #{_fcdqn_pallas.1} parent=11 // pred_fallthru
        _
      // Predicated region
      $region21: #{_fcdqn_pallas.1} parent=11 // pred_check
        %p168 = pneg %p100
      $region22: #{_fcdqn_pallas.1} parent=11 // pred_check_branch
        %170 = sbr.rel (%p168) target = $region24
      $region23: #{_fcdqn_pallas.1} parent=11 // pred_region
        _
      $region24: #{_fcdqn_pallas.1} parent=11 // pred_fallthru
        _
      // Predicated region
      $region25: #{_fcdqn_pallas.1} parent=11 // pred_check
        %p171 = pneg %p121
      $region26: #{_fcdqn_pallas.1} parent=11 // pred_check_branch
        %173 = sbr.rel (%p171) target = $region28
      $region27: #{_fcdqn_pallas.1} parent=11 // pred_region
        _
      $region28: #{_fcdqn_pallas.1} parent=11 // pred_fallthru
        _
    $region12: #{_fcdqn_pallas.1} parent=5 // pred_fallthru
      _
    %p174 = scmp.lt.s32.totalorder %s11, 2
    // Predicated region
    $region29: #{_fcdqn_pallas.1} parent=5 // pred_check
      %p175 = pneg %p174
    $region30: #{_fcdqn_pallas.1} parent=5 // pred_check_branch
      %177 = sbr.rel (%p175) target = $region32
    $region31: #{_fcdqn_pallas.1} parent=5 // pred_region
      // Predicated region
      $region33: #{_fcdqn_pallas.1} parent=31 // pred_check
        %p178 = pneg %p31
      $region34: #{_fcdqn_pallas.1} parent=31 // pred_check_branch
        %180 = sbr.rel (%p178) target = $region36
      $region35: #{_fcdqn_pallas.1} parent=31 // pred_region
        %s181 = smul.u32 19, %s11
        %p182 = scmp.lt.s32.totalorder %s181, 37
        %s183 = scalar_select %p182, %s181, 37
        %s184 = smul.addr %s183, 8
        %s185 = scalar_lea.vmem %s0, %s184
        %s186 = smul.u32 19, %s11
      $region36: #{_fcdqn_pallas.1} parent=31 // pred_fallthru
        _
    $region32: #{_fcdqn_pallas.1} parent=5 // pred_fallthru
      _
    %p187 = scmp.le.s32.totalorder 1, %s11
    %p188 = scmp.lt.s32.totalorder %s11, 3
    %p189 = pnand %p187, %p188
    %p190 = pneg %p189
    // Predicated region
    $region37: #{_fcdqn_pallas.1} parent=5 // pred_check
      _
    $region38: #{_fcdqn_pallas.1} parent=5 // pred_check_branch
      %192 = sbr.rel (%p189) target = $region40
    $region39: #{_fcdqn_pallas.1} parent=5 // pred_region
      %s193 = ssub.s32 %s11, 1
      %s194 = smul.u32 19, %s16
      %p195 = scmp.lt.s32.totalorder %s194, 37
      %s196 = scalar_select %p195, %s194, 37
      %s197 = smul.addr %s196, 8
      %s198 = scalar_lea.vmem %s0, %s197
      %p199 = pneg %p37
      %p200 = pneg %p34
      %p201 = pneg %p58
      %p202 = pneg %p55
      %p203 = pneg %p79
      %p204 = pneg %p76
      %p205 = pneg %p100
      %p206 = pneg %p97
      %p207 = pneg %p121
      %p208 = pneg %p118
      %p209 = pneg %p147
      %p210 = pneg %p144
      %s211 = smul.u32 19, %s16
      %p212 = scmp.lt.s32.totalorder %s211, 37
      %s213 = scalar_select %p212, %s211, 37
      %s214 = smul.addr %s213, 8
      %s215 = scalar_lea.vmem %s5, %s214
      %s216 = smul.u32 19, %s16
      %p217 = scmp.lt.s32.totalorder %s216, 37
      %s218 = scalar_select %p217, %s216, 37
      %s219 = smul.addr %s218, 8
      %s220 = scalar_lea.vmem %s0, %s219
      %s221 = smul.u32 19, %s16
      %s222 = smul.u32 19, %s16
      %p223 = scmp.lt.s32.totalorder %s222, 37
      %s224 = scalar_select %p223, %s222, 37
      %s225 = smul.addr %s224, 8
      %s226 = scalar_lea.vmem %s5, %s225
      %s227 = smul.u32 19, %s16
      %v229 = vld [vmem:[%s220] sm:$0xff]
      %v230 = vld [vmem:[%s220 + $0x8] sm:$0xff]
      %v231 = vld [vmem:[%s220 + $0x10] sm:$0xff]
      %v232 = vld [vmem:[%s220 + $0x18] sm:$0xff]
      %v233 = vld [vmem:[%s220 + $0x20] sm:$0xff]
      %v234 = vld [vmem:[%s220 + $0x28] sm:$0xff]
      %v235 = vld [vmem:[%s220 + $0x30] sm:$0xff]
      %v236 = vld [vmem:[%s220 + $0x38] sm:$0xff]
      %v237 = vld [vmem:[%s220 + $0x40] sm:$0xff]
      %v238 = vld [vmem:[%s220 + $0x48] sm:$0xff]
      %v239 = vld [vmem:[%s220 + $0x50] sm:$0xff]
      %v240 = vld [vmem:[%s220 + $0x58] sm:$0xff]
      %v241 = vld [vmem:[%s220 + $0x60] sm:$0xff]
      %v242 = vld [vmem:[%s220 + $0x68] sm:$0xff]
      %v243 = vld [vmem:[%s220 + $0x70] sm:$0xff]
      %v244 = vld [vmem:[%s220 + $0x78] sm:$0xff]
      %v245 = vld [vmem:[%s220 + $0x80] sm:$0xff]
      %v246 = vld [vmem:[%s220 + $0x88] sm:$0xff]
      %v247 = vld [vmem:[%s220 + $0x90] sm:$0xff]
      %v248 = vpack.c.bf16 %v230, %v229
      %v249 = vpack.c.bf16 %v232, %v231
      %v250 = vpack.c.bf16 %v234, %v233
      %v251 = vpack.c.bf16 %v236, %v235
      %v252 = vpack.c.bf16 %v238, %v237
      %v253 = vpack.c.bf16 %v240, %v239
      %v254 = vpack.c.bf16 %v242, %v241
      %v255 = vpack.c.bf16 %v244, %v243
      %v256 = vpack.c.bf16 %v246, %v245
      %v257 = vpack.c.bf16 %v247, %v247
      %v258 = vld [vmem:[%s1] sm:$0xff]
      %v259 = vld [vmem:[%s1 + $0x8] sm:$0xff]
      %v260 = vpack.c.bf16 %v259, %v258
      %v261 = vld [vmem:[%s2] sm:$0x1]
      %v263 = vlaneseq
      %v264 = vshrl.u32 %v263, 7
      %v265 = vsub.s32 0, %v264
      %v266 = vrot.slane %v261, %v265
      %vm268 = vcmask 130048
      %v270 = vsel %vm268, %v248, 0
      %v273 = vsel %vm268, %v249, 0
      %v276 = vsel %vm268, %v250, 0
      %v279 = vsel %vm268, %v251, 0
      %v282 = vsel %vm268, %v252, 0
      %v285 = vsel %vm268, %v253, 0
      %v288 = vsel %vm268, %v254, 0
      %v291 = vsel %vm268, %v255, 0
      %v294 = vsel %vm268, %v256, 0
      %v297 = vsel %vm268, %v257, 0
      %299 = vmatprep.subr.bf16.mxu0 0
      %300 = vmatpush1.bf16.msra.mxu0 %v260
      %301 = vmatprep.subr.bf16.mxu0 0
      %302 = vmatpush1.bf16.msra.mxu0 0
      %303 = vmatprep.subr.bf16.mxu0 0
      %304 = vmatpush1.bf16.msra.mxu0 0
      %305 = vmatprep.subr.bf16.mxu0 0
      %306 = vmatpush1.bf16.msra.mxu0 0
      %307 = vmatprep.subr.bf16.mxu0 0
      %308 = vmatpush1.bf16.msra.mxu0 0
      %309 = vmatprep.subr.bf16.mxu0 0
      %310 = vmatpush1.bf16.msra.mxu0 0
      %311 = vmatprep.subr.bf16.mxu0 0
      %312 = vmatpush1.bf16.msra.mxu0 0
      %313 = vmatprep.subr.bf16.mxu0 0
      %314 = vmatpush1.bf16.msra.mxu0 0
      %315 = vmatprep.subr.bf16.mxu0 0
      %316 = vmatpush1.bf16.msra.mxu0 0
      %317 = vmatprep.subr.bf16.mxu0 0
      %318 = vmatpush1.bf16.msra.mxu0 0
      %319 = vmatprep.subr.bf16.mxu0 0
      %320 = vmatpush1.bf16.msra.mxu0 0
      %321 = vmatprep.subr.bf16.mxu0 0
      %322 = vmatpush1.bf16.msra.mxu0 0
      %323 = vmatprep.subr.bf16.mxu0 0
      %324 = vmatpush1.bf16.msra.mxu0 0
      %325 = vmatprep.subr.bf16.mxu0 0
      %326 = vmatpush1.bf16.msra.mxu0 0
      %327 = vmatprep.subr.bf16.mxu0 0
      %328 = vmatpush1.bf16.msra.mxu0 0
      %329 = vmatprep.subr.bf16.mxu0 0
      %330 = vmatpush1.bf16.msra.mxu0 0
      %331 = vmatprep.mubr.bf16.mxu0 0
      %332 = vmatmul.mubr.bf16.gmra.mrb[0].mxu0 %v270
      %v333 = vpop.f32.mrb[0].mxu0
      %v334 = vadd.f32 %v266, %v333
      %v335 = vpop.f32.mrb[0].mxu0
      %v336 = vpop.f32.mrb[0].mxu0
      %v337 = vadd.f32 %v266, %v336
      %v338 = vpop.f32.mrb[0].mxu0
      %339 = vmatprep.mubr.bf16.mxu0 0
      %340 = vmatmul.mubr.bf16.gmra.mrb[0].mxu0 %v273
      %v341 = vpop.f32.mrb[0].mxu0
      %v342 = vadd.f32 %v266, %v341
      %v343 = vpop.f32.mrb[0].mxu0
      %v344 = vpop.f32.mrb[0].mxu0
      %v345 = vadd.f32 %v266, %v344
      %v346 = vpop.f32.mrb[0].mxu0
      %347 = vmatprep.mubr.bf16.mxu0 0
      %348 = vmatmul.mubr.bf16.gmra.mrb[0].mxu0 %v276
      %v349 = vpop.f32.mrb[0].mxu0
      %v350 = vadd.f32 %v266, %v349
      %v351 = vpop.f32.mrb[0].mxu0
      %v352 = vpop.f32.mrb[0].mxu0
      %v353 = vadd.f32 %v266, %v352
      %v354 = vpop.f32.mrb[0].mxu0
      %355 = vmatprep.mubr.bf16.mxu0 0
      %356 = vmatmul.mubr.bf16.gmra.mrb[0].mxu0 %v279
      %v357 = vpop.f32.mrb[0].mxu0
      %v358 = vadd.f32 %v266, %v357
      %v359 = vpop.f32.mrb[0].mxu0
      %v360 = vpop.f32.mrb[0].mxu0
      %v361 = vadd.f32 %v266, %v360
      %v362 = vpop.f32.mrb[0].mxu0
      %363 = vmatprep.mubr.bf16.mxu0 0
      %364 = vmatmul.mubr.bf16.gmra.mrb[0].mxu0 %v282
      %v365 = vpop.f32.mrb[0].mxu0
      %v366 = vadd.f32 %v266, %v365
      %v367 = vpop.f32.mrb[0].mxu0
      %v368 = vpop.f32.mrb[0].mxu0
      %v369 = vadd.f32 %v266, %v368
      %v370 = vpop.f32.mrb[0].mxu0
      %371 = vmatprep.mubr.bf16.mxu0 0
      %372 = vmatmul.mubr.bf16.gmra.mrb[0].mxu0 %v285
      %v373 = vpop.f32.mrb[0].mxu0
      %v374 = vadd.f32 %v266, %v373
      %v375 = vpop.f32.mrb[0].mxu0
      %v376 = vpop.f32.mrb[0].mxu0
      %v377 = vadd.f32 %v266, %v376
      %v378 = vpop.f32.mrb[0].mxu0
      %379 = vmatprep.mubr.bf16.mxu0 0
      %380 = vmatmul.mubr.bf16.gmra.mrb[0].mxu0 %v288
      %v381 = vpop.f32.mrb[0].mxu0
      %v382 = vadd.f32 %v266, %v381
      %v383 = vpop.f32.mrb[0].mxu0
      %v384 = vpop.f32.mrb[0].mxu0
      %v385 = vadd.f32 %v266, %v384
      %v386 = vpop.f32.mrb[0].mxu0
      %387 = vmatprep.mubr.bf16.mxu0 0
      %388 = vmatmul.mubr.bf16.gmra.mrb[0].mxu0 %v291
      %v389 = vpop.f32.mrb[0].mxu0
      %v390 = vadd.f32 %v266, %v389
      %v391 = vpop.f32.mrb[0].mxu0
      %v392 = vpop.f32.mrb[0].mxu0
      %v393 = vadd.f32 %v266, %v392
      %v394 = vpop.f32.mrb[0].mxu0
      %395 = vmatprep.mubr.bf16.mxu0 0
      %396 = vmatmul.mubr.bf16.gmra.mrb[0].mxu0 %v294
      %v397 = vpop.f32.mrb[0].mxu0
      %v398 = vadd.f32 %v266, %v397
      %v399 = vpop.f32.mrb[0].mxu0
      %v400 = vpop.f32.mrb[0].mxu0
      %v401 = vadd.f32 %v266, %v400
      %v402 = vpop.f32.mrb[0].mxu0
      %403 = vmatprep.mubr.bf16.mxu0 0
      %404 = vmatmul.mubr.bf16.gmra.mrb[0].mxu0 %v297
      %v405 = vpop.f32.mrb[0].mxu0
      %v406 = vadd.f32 %v266, %v405
      %v407 = vpop.f32.mrb[0].mxu0
      %v408 = vpop.f32.mrb[0].mxu0
      %v409 = vpop.f32.mrb[0].mxu0
      %410 = vdwg.mxu0
      %v411 = vtanh.pop %v334
      %v412 = vtanh.pop %v337
      %v413 = vtanh.pop %v342
      %v414 = vtanh.pop %v345
      %v415 = vtanh.pop %v350
      %v416 = vtanh.pop %v353
      %v417 = vtanh.pop %v358
      %v418 = vtanh.pop %v361
      %v419 = vtanh.pop %v366
      %v420 = vtanh.pop %v369
      %v421 = vtanh.pop %v374
      %v422 = vtanh.pop %v377
      %v423 = vtanh.pop %v382
      %v424 = vtanh.pop %v385
      %v425 = vtanh.pop %v390
      %v426 = vtanh.pop %v393
      %v427 = vtanh.pop %v398
      %v428 = vtanh.pop %v401
      %v429 = vtanh.pop %v406
      %v430 = vld [vmem:[%s3] sm:$0xff]
      %v431 = vld [vmem:[%s3 + $0x8] sm:$0xff]
      %v432 = vld [vmem:[%s3 + $0x10] sm:$0xff]
      %v433 = vld [vmem:[%s3 + $0x18] sm:$0xff]
      %v434 = vpack.c.bf16 %v431, %v430
      %v435 = vpack.c.bf16 %v433, %v432
      %v436 = vpack.c.bf16 %v412, %v411
      %v437 = vpack.c.bf16 %v414, %v413
      %v438 = vpack.c.bf16 %v416, %v415
      %v439 = vpack.c.bf16 %v418, %v417
      %v440 = vpack.c.bf16 %v420, %v419
      %v441 = vpack.c.bf16 %v422, %v421
      %v442 = vpack.c.bf16 %v424, %v423
      %v443 = vpack.c.bf16 %v426, %v425
      %v444 = vpack.c.bf16 %v428, %v427
      %v445 = vpack.c.bf16 %v429, %v429
      %v446 = vld [vmem:[%s4] sm:$0x1]
      %v448 = vlaneseq
      %v449 = vshrl.u32 %v448, 7
      %v450 = vsub.s32 0, %v449
      %v451 = vrot.slane %v446, %v450
      %vm453 = vcmask 261120
      %v455 = vsel %vm453, %v436, 0
      %v458 = vsel %vm453, %v437, 0
      %v461 = vsel %vm453, %v438, 0
      %v464 = vsel %vm453, %v439, 0
      %v467 = vsel %vm453, %v440, 0
      %v470 = vsel %vm453, %v441, 0
      %v473 = vsel %vm453, %v442, 0
      %v476 = vsel %vm453, %v443, 0
      %v479 = vsel %vm453, %v444, 0
      %v482 = vsel %vm453, %v445, 0
      %484 = vmatprep.subr.bf16.mxu0 0
      %485 = vmatpush1.bf16.msra.mxu0 %v434
      %486 = vmatprep.subr.bf16.mxu0 0
      %487 = vmatpush1.bf16.msra.mxu0 %v435
      %488 = vmatprep.subr.bf16.mxu0 0
      %489 = vmatpush1.bf16.msra.mxu0 0
      %490 = vmatprep.subr.bf16.mxu0 0
      %491 = vmatpush1.bf16.msra.mxu0 0
      %492 = vmatprep.subr.bf16.mxu0 0
      %493 = vmatpush1.bf16.msra.mxu0 0
      %494 = vmatprep.subr.bf16.mxu0 0
      %495 = vmatpush1.bf16.msra.mxu0 0
      %496 = vmatprep.subr.bf16.mxu0 0
      %497 = vmatpush1.bf16.msra.mxu0 0
      %498 = vmatprep.subr.bf16.mxu0 0
      %499 = vmatpush1.bf16.msra.mxu0 0
      %500 = vmatprep.subr.bf16.mxu0 0
      %501 = vmatpush1.bf16.msra.mxu0 0
      %502 = vmatprep.subr.bf16.mxu0 0
      %503 = vmatpush1.bf16.msra.mxu0 0
      %504 = vmatprep.subr.bf16.mxu0 0
      %505 = vmatpush1.bf16.msra.mxu0 0
      %506 = vmatprep.subr.bf16.mxu0 0
      %507 = vmatpush1.bf16.msra.mxu0 0
      %508 = vmatprep.subr.bf16.mxu0 0
      %509 = vmatpush1.bf16.msra.mxu0 0
      %510 = vmatprep.subr.bf16.mxu0 0
      %511 = vmatpush1.bf16.msra.mxu0 0
      %512 = vmatprep.subr.bf16.mxu0 0
      %513 = vmatpush1.bf16.msra.mxu0 0
      %514 = vmatprep.subr.bf16.mxu0 0
      %515 = vmatpush1.bf16.msra.mxu0 0
      %516 = vmatprep.mubr.bf16.mxu0 0
      %517 = vmatmul.mubr.bf16.gmra.mrb[0].mxu0 %v455
      %v518 = vpop.f32.mrb[0].mxu0
      %v519 = vadd.f32 %v451, %v518
      %v520 = vpop.f32.mrb[0].mxu0
      %v521 = vpop.f32.mrb[0].mxu0
      %v522 = vadd.f32 %v451, %v521
      %v523 = vpop.f32.mrb[0].mxu0
      %524 = vmatprep.mubr.bf16.mxu0 0
      %525 = vmatmul.mubr.bf16.gmra.mrb[0].mxu0 %v458
      %v526 = vpop.f32.mrb[0].mxu0
      %v527 = vadd.f32 %v451, %v526
      %v528 = vpop.f32.mrb[0].mxu0
      %v529 = vpop.f32.mrb[0].mxu0
      %v530 = vadd.f32 %v451, %v529
      %v531 = vpop.f32.mrb[0].mxu0
      %532 = vmatprep.mubr.bf16.mxu0 0
      %533 = vmatmul.mubr.bf16.gmra.mrb[0].mxu0 %v461
      %v534 = vpop.f32.mrb[0].mxu0
      %v535 = vadd.f32 %v451, %v534
      %v536 = vpop.f32.mrb[0].mxu0
      %v537 = vpop.f32.mrb[0].mxu0
      %v538 = vadd.f32 %v451, %v537
      %v539 = vpop.f32.mrb[0].mxu0
      %540 = vmatprep.mubr.bf16.mxu0 0
      %541 = vmatmul.mubr.bf16.gmra.mrb[0].mxu0 %v464
      %v542 = vpop.f32.mrb[0].mxu0
      %v543 = vadd.f32 %v451, %v542
      %v544 = vpop.f32.mrb[0].mxu0
      %v545 = vpop.f32.mrb[0].mxu0
      %v546 = vadd.f32 %v451, %v545
      %v547 = vpop.f32.mrb[0].mxu0
      %548 = vmatprep.mubr.bf16.mxu0 0
      %549 = vmatmul.mubr.bf16.gmra.mrb[0].mxu0 %v467
      %v550 = vpop.f32.mrb[0].mxu0
      %v551 = vadd.f32 %v451, %v550
      %v552 = vpop.f32.mrb[0].mxu0
      %v553 = vpop.f32.mrb[0].mxu0
      %v554 = vadd.f32 %v451, %v553
      %v555 = vpop.f32.mrb[0].mxu0
      %556 = vmatprep.mubr.bf16.mxu0 0
      %557 = vmatmul.mubr.bf16.gmra.mrb[0].mxu0 %v470
      %v558 = vpop.f32.mrb[0].mxu0
      %v559 = vadd.f32 %v451, %v558
      %v560 = vpop.f32.mrb[0].mxu0
      %v561 = vpop.f32.mrb[0].mxu0
      %v562 = vadd.f32 %v451, %v561
      %v563 = vpop.f32.mrb[0].mxu0
      %564 = vmatprep.mubr.bf16.mxu0 0
      %565 = vmatmul.mubr.bf16.gmra.mrb[0].mxu0 %v473
      %v566 = vpop.f32.mrb[0].mxu0
      %v567 = vadd.f32 %v451, %v566
      %v568 = vpop.f32.mrb[0].mxu0
      %v569 = vpop.f32.mrb[0].mxu0
      %v570 = vadd.f32 %v451, %v569
      %v571 = vpop.f32.mrb[0].mxu0
      %572 = vmatprep.mubr.bf16.mxu0 0
      %573 = vmatmul.mubr.bf16.gmra.mrb[0].mxu0 %v476
      %v574 = vpop.f32.mrb[0].mxu0
      %v575 = vadd.f32 %v451, %v574
      %v576 = vpop.f32.mrb[0].mxu0
      %v577 = vpop.f32.mrb[0].mxu0
      %v578 = vadd.f32 %v451, %v577
      %v579 = vpop.f32.mrb[0].mxu0
      %580 = vmatprep.mubr.bf16.mxu0 0
      %581 = vmatmul.mubr.bf16.gmra.mrb[0].mxu0 %v479
      %v582 = vpop.f32.mrb[0].mxu0
      %v583 = vadd.f32 %v451, %v582
      %v584 = vpop.f32.mrb[0].mxu0
      %v585 = vpop.f32.mrb[0].mxu0
      %v586 = vadd.f32 %v451, %v585
      %v587 = vpop.f32.mrb[0].mxu0
      %588 = vmatprep.mubr.bf16.mxu0 0
      %589 = vmatmul.mubr.bf16.gmra.mrb[0].mxu0 %v482
      %v590 = vpop.f32.mrb[0].mxu0
      %v591 = vadd.f32 %v451, %v590
      %v592 = vpop.f32.mrb[0].mxu0
      %v593 = vpop.f32.mrb[0].mxu0
      %v594 = vpop.f32.mrb[0].mxu0
      %595 = vdwg.mxu0
      %vm596 = vcmask 31744
      %597 = vst.msk [vmem:[%s226] sm:$0xff] %vm596, %v519
      %598 = vst.msk [vmem:[%s226 + $0x8] sm:$0xff] %vm596, %v522
      %599 = vst.msk [vmem:[%s226 + $0x10] sm:$0xff] %vm596, %v527
      %600 = vst.msk [vmem:[%s226 + $0x18] sm:$0xff] %vm596, %v530
      %601 = vst.msk [vmem:[%s226 + $0x20] sm:$0xff] %vm596, %v535
      %602 = vst.msk [vmem:[%s226 + $0x28] sm:$0xff] %vm596, %v538
      %603 = vst.msk [vmem:[%s226 + $0x30] sm:$0xff] %vm596, %v543
      %604 = vst.msk [vmem:[%s226 + $0x38] sm:$0xff] %vm596, %v546
      %605 = vst.msk [vmem:[%s226 + $0x40] sm:$0xff] %vm596, %v551
      %606 = vst.msk [vmem:[%s226 + $0x48] sm:$0xff] %vm596, %v554
      %607 = vst.msk [vmem:[%s226 + $0x50] sm:$0xff] %vm596, %v559
      %608 = vst.msk [vmem:[%s226 + $0x58] sm:$0xff] %vm596, %v562
      %609 = vst.msk [vmem:[%s226 + $0x60] sm:$0xff] %vm596, %v567
      %610 = vst.msk [vmem:[%s226 + $0x68] sm:$0xff] %vm596, %v570
      %611 = vst.msk [vmem:[%s226 + $0x70] sm:$0xff] %vm596, %v575
      %612 = vst.msk [vmem:[%s226 + $0x78] sm:$0xff] %vm596, %v578
      %613 = vst.msk [vmem:[%s226 + $0x80] sm:$0xff] %vm596, %v583
      %614 = vst.msk [vmem:[%s226 + $0x88] sm:$0xff] %vm596, %v586
      %615 = vst.msk [vmem:[%s226 + $0x90] sm:$0xff] %vm596, %v591
      %s616 = smul.u32 19, %s16
      %p617 = scmp.lt.s32.totalorder %s616, 37
      %s618 = scalar_select %p617, %s616, 37
      %s619 = smul.addr %s618, 8
      %s620 = scalar_lea.vmem %s5, %s619
      // Predicated region
      $region41: #{_fcdqn_pallas.1} parent=39 // pred_check
        %p621 = pneg %p144
      $region42: #{_fcdqn_pallas.1} parent=39 // pred_check_branch
        %623 = sbr.rel (%p621) target = $region44
      $region43: #{_fcdqn_pallas.1} parent=39 // pred_region
        %s624 = smul.u32 19, %s16
      $region44: #{_fcdqn_pallas.1} parent=39 // pred_fallthru
        _
    $region40: #{_fcdqn_pallas.1} parent=5 // pred_fallthru
      _
    %p625 = scmp.le.s32.totalorder 2, %s11
    // Predicated region
    $region45: #{_fcdqn_pallas.1} parent=5 // pred_check
      %p626 = pneg %p625
    $region46: #{_fcdqn_pallas.1} parent=5 // pred_check_branch
      %628 = sbr.rel (%p626) target = $region48
    $region47: #{_fcdqn_pallas.1} parent=5 // pred_region
      %s629 = ssub.s32 %s11, 2
      // Predicated region
      $region49: #{_fcdqn_pallas.1} parent=47 // pred_check
        %p630 = pneg %p150
      $region50: #{_fcdqn_pallas.1} parent=47 // pred_check_branch
        %632 = sbr.rel (%p630) target = $region52
      $region51: #{_fcdqn_pallas.1} parent=47 // pred_region
        %s633 = smul.u32 19, %s17
        %p634 = scmp.lt.s32.totalorder %s633, 37
        %s635 = scalar_select %p634, %s633, 37
        %s636 = smul.addr %s635, 8
        %s637 = scalar_lea.vmem %s5, %s636
      $region52: #{_fcdqn_pallas.1} parent=47 // pred_fallthru
        _
    $region48: #{_fcdqn_pallas.1} parent=5 // pred_fallthru
      _
  $region6: #{_fcdqn_pallas.1} parent=0 // loop_footer
    %s15 = sadd.s32 1, %s11
  $region7: #{_fcdqn_pallas.1} parent=0 // loop_footer_branch
    %10 = sbr.rel target = $region3
  $region8: #{_fcdqn_pallas.1} parent=0 // loop_exit
    _

</llo_original>
